<compile_context>
chip_gen: v7x
topology: tpu7x:2x2x1
jax: 0.10.0
libtpu: 0.0.40
codegen_flags: <defaults>
</compile_context>

<pallas_src>
import functools

import jax
import jax.numpy as jnp
from jax.experimental import pallas as pl
from jax.experimental.pallas import tpu as pltpu

LN_EPS = 1e-5  # PyTorch nn.LayerNorm default


def _round_up(x, m):
    return (x + m - 1) // m * m


def _layernorm(h, gamma, beta):
    """LayerNorm over the last axis (biased variance), matches nn.LayerNorm."""
    mean = jnp.mean(h, axis=-1, keepdims=True)
    c = h - mean
    var = jnp.mean(c * c, axis=-1, keepdims=True)
    return c * jax.lax.rsqrt(var + LN_EPS) * gamma + beta


def _dual_layernorm(h, gamma, beta, half, left_mask_fn):
    """LayerNorm applied independently to h[:, :half] and h[:, half:].

    Uses masked lane reductions (no slicing / reshaping) so the fused
    [TB, 2H] slab keeps its natural lane layout and the value / advantage
    statistics never mix.  The lane mask is built once per distinct width
    (via left_mask_fn) and reused across the unrolled layers.
    """
    n = h.shape[-1]
    left = left_mask_fn(n, half)
    inv_l = 1.0 / float(half)
    inv_r = 1.0 / float(n - half)

    sum_l = jnp.sum(jnp.where(left, h, 0.0), axis=-1, keepdims=True)
    sum_r = jnp.sum(jnp.where(left, 0.0, h), axis=-1, keepdims=True)
    mean = jnp.where(left, sum_l * inv_l, sum_r * inv_r)

    c = h - mean
    c2 = c * c
    var_l = jnp.sum(jnp.where(left, c2, 0.0), axis=-1, keepdims=True) * inv_l
    var_r = jnp.sum(jnp.where(left, 0.0, c2), axis=-1, keepdims=True) * inv_r
    var = jnp.where(left, var_l, var_r)

    return c * jax.lax.rsqrt(var + LN_EPS) * gamma + beta


def _make_kernel(half_widths):
    """Kernel closure: fused feature layer + block-diagonal dual-stream chain
    + pre-fused (linear) dueling head."""

    def kernel(*refs):
        x_ref, out_ref = refs[0], refs[-1]
        params = refs[1:-1]
        idx = 0

        def take(n):
            nonlocal idx
            r = params[idx:idx + n]
            idx += n
            return r

        # Build each distinct (width, half) lane mask exactly once per trace.
        mask_cache = {}

        def left_mask(n, half):
            if (n, half) not in mask_cache:
                ids = jax.lax.broadcasted_iota(jnp.int32, (1, n), 1)
                mask_cache[(n, half)] = ids < half
            return mask_cache[(n, half)]

        # ---- feature layer: Linear -> ReLU -> LayerNorm -> Dropout(eval) ----
        w_ref, b_ref, g_ref, be_ref = take(4)
        w = w_ref[...]
        h = jnp.dot(x_ref[...].astype(w.dtype), w,
                    preferred_element_type=jnp.float32) + b_ref[...]
        h = jnp.maximum(h, 0.0)
        h = _layernorm(h, g_ref[...], be_ref[...])

        # ---- fused value + advantage hidden layers (block-diagonal weights) ----
        for hw in half_widths:
            w_ref, b_ref, g_ref, be_ref = take(4)
            w = w_ref[...]
            h = jnp.dot(h.astype(w.dtype), w,
                        preferred_element_type=jnp.float32) + b_ref[...]
            h = jnp.maximum(h, 0.0)
            h = _dual_layernorm(h, g_ref[...], be_ref[...], hw, left_mask)

        # ---- pre-fused dueling head: Q = V + A - mean(A) folded into one Linear ----
        wq_ref, bq_ref = take(2)
        wq = wq_ref[...]
        q = jnp.dot(h.astype(wq.dtype), wq,
                    preferred_element_type=jnp.float32) + bq_ref[...]
        out_ref[...] = q.astype(out_ref.dtype)

    return kernel


# ----------------------------------------------------------------------------
# Parameter construction (PyTorch layout) and fusion into the kernel layout.
# ----------------------------------------------------------------------------

def init_params(key, state_dim, action_dim, hidden_sizes):
    """Deterministic init mimicking PyTorch's default Linear init (U(+-1/sqrt(fan_in)))."""

    def linear(key, fan_in, fan_out):
        kw, kb = jax.random.split(key)
        bound = 1.0 / jnp.sqrt(float(fan_in))
        w = jax.random.uniform(kw, (fan_in, fan_out), jnp.float32, -bound, bound)
        b = jax.random.uniform(kb, (1, fan_out), jnp.float32, -bound, bound)
        return w, b

    def ln(dim):
        return jnp.ones((1, dim), jnp.float32), jnp.zeros((1, dim), jnp.float32)

    keys = jax.random.split(key, 1 + 2 * len(hidden_sizes) + 2)
    kiter = iter(keys)

    flat = []
    # feature layer
    w, b = linear(next(kiter), state_dim, hidden_sizes[0])
    g, be = ln(hidden_sizes[0])
    flat += [w, b, g, be]

    # value stream
    cur = hidden_sizes[0]
    for hs in hidden_sizes[1:]:
        w, b = linear(next(kiter), cur, hs)
        g, be = ln(hs)
        flat += [w, b, g, be]
        cur = hs
    w, b = linear(next(kiter), cur, 1)
    flat += [w, b]

    # advantage stream
    cur = hidden_sizes[0]
    for hs in hidden_sizes[1:]:
        w, b = linear(next(kiter), cur, hs)
        g, be = ln(hs)
        flat += [w, b, g, be]
        cur = hs
    w, b = linear(next(kiter), cur, action_dim)
    flat += [w, b]

    return flat


def _block_diag(a, b):
    top = jnp.concatenate([a, jnp.zeros((a.shape[0], b.shape[1]), a.dtype)], axis=1)
    bot = jnp.concatenate([jnp.zeros((b.shape[0], a.shape[1]), b.dtype), b], axis=1)
    return jnp.concatenate([top, bot], axis=0)


def fuse_params(flat, action_dim, hidden_sizes, matmul_dtype=jnp.float32):
    """Pack per-stream params into block-diagonal fused params for the kernel.

    The final value/advantage heads and the dueling combination
    Q = V + A - mean(A) are all linear in the last hidden state, so they are
    folded here (in f32) into ONE head of width `action_dim`.
    Only matmul weights are cast to `matmul_dtype` (bf16 recommended on
    v6e/v7x); biases and LayerNorm params stay f32.
    """
    n_hidden = len(hidden_sizes) - 1
    idx = 0

    def take(n):
        nonlocal idx
        r = flat[idx:idx + n]
        idx += n
        return r

    w0, b0, g0, be0 = take(4)
    fused = [w0.astype(matmul_dtype), b0, g0, be0]

    v_hidden = [take(4) for _ in range(n_hidden)]
    wv, bv = take(2)
    a_hidden = [take(4) for _ in range(n_hidden)]
    wa, ba = take(2)

    for k in range(n_hidden):
        w_v, b_v, g_v, be_v = v_hidden[k]
        w_a, b_a, g_a, be_a = a_hidden[k]
        if k == 0:
            w_f = jnp.concatenate([w_v, w_a], axis=1)        # [H0, 2*H1]
        else:
            w_f = _block_diag(w_v, w_a)                       # [2*H_{k-1}, 2*H_k]
        fused += [w_f.astype(matmul_dtype),
                  jnp.concatenate([b_v, b_a], axis=1),
                  jnp.concatenate([g_v, g_a], axis=1),
                  jnp.concatenate([be_v, be_a], axis=1)]

    # Pre-fold dueling head: Q_j = V + A_j - mean_k(A_k)  (linear in h).
    if n_hidden == 0:
        wv_full, wa_full = wv, wa                              # both read feats
    else:
        hv, ha = wv.shape[0], wa.shape[0]
        wv_full = jnp.concatenate([wv, jnp.zeros((ha, 1), wv.dtype)], axis=0)   # [2H,1]
        wa_full = jnp.concatenate([jnp.zeros((hv, action_dim), wa.dtype), wa],
                                  axis=0)                                       # [2H,A]
    w_q = wv_full + wa_full - jnp.mean(wa_full, axis=1, keepdims=True)          # [2H,A]
    b_q = bv + ba - jnp.mean(ba, axis=1, keepdims=True)                         # [1,A]
    fused += [w_q.astype(matmul_dtype), b_q]
    return fused


# ----------------------------------------------------------------------------
# Pallas entry point.
# ----------------------------------------------------------------------------

@functools.partial(jax.jit, static_argnames=("action_dim", "hidden_sizes", "block_batch"))
def dueling_dqn_forward(x, fused_params, *, action_dim, hidden_sizes, block_batch=1024):
    """x: [batch, state_dim] float32 -> Q: [batch, action_dim] float32."""
    batch, state_dim = x.shape
    half_widths = tuple(hidden_sizes[1:])

    # --- choose batch tile: big tiles amortise the ~0.35us/grid-step overhead;
    #     keep >= 2 steps for large batches so both v7x TensorCores get work. ---
    tb = max(8, min(block_batch, _round_up(batch, 8)))
    if batch >= 512 and pl.cdiv(batch, tb) < 2:
        tb = _round_up(pl.cdiv(batch, 2), 8)
    grid = pl.cdiv(batch, tb)
    padded = grid * tb

    if padded != batch:
        # Minimal tail pad (< tb rows); no pad at all when batch % tb == 0.
        x = jnp.pad(x, ((0, padded - batch), (0, 0)))

    kernel = _make_kernel(half_widths)

    x_spec = pl.BlockSpec((tb, state_dim), lambda i: (i, 0))
    # Full-size blocks with a constant index_map -> params are DMA'd once and
    # stay VMEM-resident across all batch-grid steps.
    param_specs = [pl.BlockSpec(p.shape, lambda i: (0, 0)) for p in fused_params]
    # Narrow, unpadded output: block last dim == full array dim (action_dim).
    out_spec = pl.BlockSpec((tb, action_dim), lambda i: (i, 0))

    q = pl.pallas_call(
        kernel,
        out_shape=jax.ShapeDtypeStruct((padded, action_dim), jnp.float32),
        grid=(grid,),
        in_specs=[x_spec] + param_specs,
        out_specs=out_spec,
        compiler_params=pltpu.CompilerParams(
            dimension_semantics=("parallel",)),
    )(x, *fused_params)

    return q if padded == batch else q[:batch]


# ----------------------------------------------------------------------------
# Pure-JAX reference (unfused, mirrors the PyTorch module) for a sanity check.
# ----------------------------------------------------------------------------

def reference_forward(x, flat_params, action_dim, hidden_sizes):
    n_hidden = len(hidden_sizes) - 1
    idx = 0

    def take(n):
        nonlocal idx
        r = flat_params[idx:idx + n]
        idx += n
        return r

    w, b, g, be = take(4)
    feats = _layernorm(jnp.maximum(x @ w + b, 0.0), g, be)

    v = feats
    for _ in range(n_hidden):
        w, b, g, be = take(4)
        v = _layernorm(jnp.maximum(v @ w + b, 0.0), g, be)
    w, b = take(2)
    value = v @ w + b

    a = feats
    for _ in range(n_hidden):
        w, b, g, be = take(4)
        a = _layernorm(jnp.maximum(a @ w + b, 0.0), g, be)
    w, b = take(2)
    adv = a @ w + b

    return value + (adv - jnp.mean(adv, axis=1, keepdims=True))


if __name__ == "__main__":
    STATE_DIM = 16
    ACTION_DIM = 4
    HIDDEN_SIZES = (32, 32)
    BATCH = 2

    key = jax.random.PRNGKey(0)
    kx, kp = jax.random.split(key)
    x = jax.random.normal(kx, (BATCH, STATE_DIM), jnp.float32)

    params = init_params(kp, STATE_DIM, ACTION_DIM, list(HIDDEN_SIZES))
    q_ref = reference_forward(x, params, ACTION_DIM, HIDDEN_SIZES)

    # 1) exact-semantics parity (f32 matmul weights)
    fused_f32 = fuse_params(params, ACTION_DIM, HIDDEN_SIZES, matmul_dtype=jnp.float32)
    q32 = dueling_dqn_forward(x, fused_f32, action_dim=ACTION_DIM,
                              hidden_sizes=HIDDEN_SIZES)
    q32 = jax.block_until_ready(q32)
    assert q32.shape == (BATCH, ACTION_DIM)
    assert jnp.allclose(q32, q_ref, atol=1e-4, rtol=1e-4), (
        f"f32 max abs err {jnp.max(jnp.abs(q32 - q_ref))}")

    # 2) bf16 MXU-weight path (v6e/v7x perf option); f32 accumulation + f32 LN math.
    fused_bf16 = fuse_params(params, ACTION_DIM, HIDDEN_SIZES, matmul_dtype=jnp.bfloat16)
    q16 = dueling_dqn_forward(x, fused_bf16, action_dim=ACTION_DIM,
                              hidden_sizes=HIDDEN_SIZES)
    q16 = jax.block_until_ready(q16)
    assert q16.shape == (BATCH, ACTION_DIM)
    assert jnp.allclose(q16, q_ref, atol=5e-2, rtol=5e-2), (
        f"bf16 max abs err {jnp.max(jnp.abs(q16 - q_ref))}")

    print("KERNEL_OK")
</pallas_src>

<mosaic_0001>
module attributes {stable_mosaic.version = 11 : i64} {
  func.func @kernel(%arg0: i32, %arg1: memref<8x16xf32, #tpu.memory_space<vmem>>, %arg2: memref<16x32xf32, #tpu.memory_space<vmem>>, %arg3: memref<1x32xf32, #tpu.memory_space<vmem>>, %arg4: memref<1x32xf32, #tpu.memory_space<vmem>>, %arg5: memref<1x32xf32, #tpu.memory_space<vmem>>, %arg6: memref<32x64xf32, #tpu.memory_space<vmem>>, %arg7: memref<1x64xf32, #tpu.memory_space<vmem>>, %arg8: memref<1x64xf32, #tpu.memory_space<vmem>>, %arg9: memref<1x64xf32, #tpu.memory_space<vmem>>, %arg10: memref<64x4xf32, #tpu.memory_space<vmem>>, %arg11: memref<1x4xf32, #tpu.memory_space<vmem>>, %arg12: memref<8x4xf32, #tpu.memory_space<vmem>>) attributes {dimension_semantics = [#tpu.dimension_semantics<parallel>], iteration_bounds = array<i64: 1>, scalar_prefetch = 0 : i64, scratch_operands = 0 : i64, tpu.core_type = #tpu.core_type<tc>, window_params = [{transform_indices = @transform_0, window_bounds = array<i64: 8, 16>}, {pipeline_mode = #tpu.pipeline_mode<synchronous>, transform_indices = @transform_1, window_bounds = array<i64: 16, 32>}, {pipeline_mode = #tpu.pipeline_mode<synchronous>, transform_indices = @transform_2, window_bounds = array<i64: 1, 32>}, {pipeline_mode = #tpu.pipeline_mode<synchronous>, transform_indices = @transform_3, window_bounds = array<i64: 1, 32>}, {pipeline_mode = #tpu.pipeline_mode<synchronous>, transform_indices = @transform_4, window_bounds = array<i64: 1, 32>}, {pipeline_mode = #tpu.pipeline_mode<synchronous>, transform_indices = @transform_5, window_bounds = array<i64: 32, 64>}, {pipeline_mode = #tpu.pipeline_mode<synchronous>, transform_indices = @transform_6, window_bounds = array<i64: 1, 64>}, {pipeline_mode = #tpu.pipeline_mode<synchronous>, transform_indices = @transform_7, window_bounds = array<i64: 1, 64>}, {pipeline_mode = #tpu.pipeline_mode<synchronous>, transform_indices = @transform_8, window_bounds = array<i64: 1, 64>}, {pipeline_mode = #tpu.pipeline_mode<synchronous>, transform_indices = @transform_9, window_bounds = array<i64: 64, 4>}, {pipeline_mode = #tpu.pipeline_mode<synchronous>, transform_indices = @transform_10, window_bounds = array<i64: 1, 4>}, {transform_indices = @transform_11, window_bounds = array<i64: 8, 4>}]} {
    %c0 = arith.constant 0 : index
    %c0_0 = arith.constant 0 : index
    %0 = vector.load %arg2[%c0, %c0_0] : memref<16x32xf32, #tpu.memory_space<vmem>>, vector<16x32xf32>
    %c0_1 = arith.constant 0 : index
    %c0_2 = arith.constant 0 : index
    %1 = vector.load %arg1[%c0_1, %c0_2] : memref<8x16xf32, #tpu.memory_space<vmem>>, vector<8x16xf32>
    %cst = arith.constant dense<0.000000e+00> : vector<8x32xf32>
    %2 = tpu.matmul %1, %0, %cst {dimension_numbers = #tpu.dot_dimension_numbers<[1], [0], [0], [1], [0, 0, 1, 1], [], []>} : vector<8x16xf32>, vector<16x32xf32>, vector<8x32xf32> -> vector<8x32xf32>
    %c0_3 = arith.constant 0 : index
    %c0_4 = arith.constant 0 : index
    %3 = vector.load %arg3[%c0_3, %c0_4] : memref<1x32xf32, #tpu.memory_space<vmem>>, vector<1x32xf32>
    %4 = vector.broadcast %3 : vector<1x32xf32> to vector<8x32xf32>
    %5 = arith.addf %2, %4 : vector<8x32xf32>
    %cst_5 = arith.constant 0.000000e+00 : f32
    %6 = vector.broadcast %cst_5 : f32 to vector<8x32xf32>
    %7 = arith.maximumf %5, %6 : vector<8x32xf32>
    %c0_6 = arith.constant 0 : index
    %c0_7 = arith.constant 0 : index
    %8 = vector.load %arg4[%c0_6, %c0_7] : memref<1x32xf32, #tpu.memory_space<vmem>>, vector<1x32xf32>
    %c0_8 = arith.constant 0 : index
    %c0_9 = arith.constant 0 : index
    %9 = vector.load %arg5[%c0_8, %c0_9] : memref<1x32xf32, #tpu.memory_space<vmem>>, vector<1x32xf32>
    %cst_10 = arith.constant dense<0.000000e+00> : vector<8xf32>
    %10 = vector.multi_reduction <add>, %7, %cst_10 [1] : vector<8x32xf32> to vector<8xf32>
    %11 = vector.shape_cast %10 : vector<8xf32> to vector<8x1xf32>
    %cst_11 = arith.constant 3.200000e+01 : f32
    %12 = vector.broadcast %cst_11 : f32 to vector<8x1xf32>
    %13 = arith.divf %11, %12 : vector<8x1xf32>
    %14 = vector.broadcast %13 : vector<8x1xf32> to vector<8x32xf32>
    %15 = arith.subf %7, %14 : vector<8x32xf32>
    %16 = arith.mulf %15, %15 : vector<8x32xf32>
    %cst_12 = arith.constant dense<0.000000e+00> : vector<8xf32>
    %17 = vector.multi_reduction <add>, %16, %cst_12 [1] : vector<8x32xf32> to vector<8xf32>
    %18 = vector.shape_cast %17 : vector<8xf32> to vector<8x1xf32>
    %cst_13 = arith.constant 3.200000e+01 : f32
    %19 = vector.broadcast %cst_13 : f32 to vector<8x1xf32>
    %20 = arith.divf %18, %19 : vector<8x1xf32>
    %cst_14 = arith.constant 9.99999974E-6 : f32
    %21 = vector.broadcast %cst_14 : f32 to vector<8x1xf32>
    %22 = arith.addf %20, %21 : vector<8x1xf32>
    %23 = math.rsqrt %22 : vector<8x1xf32>
    %24 = vector.broadcast %23 : vector<8x1xf32> to vector<8x32xf32>
    %25 = arith.mulf %15, %24 : vector<8x32xf32>
    %26 = vector.broadcast %8 : vector<1x32xf32> to vector<8x32xf32>
    %27 = arith.mulf %25, %26 : vector<8x32xf32>
    %28 = vector.broadcast %9 : vector<1x32xf32> to vector<8x32xf32>
    %29 = arith.addf %27, %28 : vector<8x32xf32>
    %c0_15 = arith.constant 0 : index
    %c0_16 = arith.constant 0 : index
    %30 = vector.load %arg6[%c0_15, %c0_16] : memref<32x64xf32, #tpu.memory_space<vmem>>, vector<32x64xf32>
    %cst_17 = arith.constant dense<0.000000e+00> : vector<8x64xf32>
    %31 = tpu.matmul %29, %30, %cst_17 {dimension_numbers = #tpu.dot_dimension_numbers<[1], [0], [0], [1], [0, 0, 1, 1], [], []>} : vector<8x32xf32>, vector<32x64xf32>, vector<8x64xf32> -> vector<8x64xf32>
    %c0_18 = arith.constant 0 : index
    %c0_19 = arith.constant 0 : index
    %32 = vector.load %arg7[%c0_18, %c0_19] : memref<1x64xf32, #tpu.memory_space<vmem>>, vector<1x64xf32>
    %33 = vector.broadcast %32 : vector<1x64xf32> to vector<8x64xf32>
    %34 = arith.addf %31, %33 : vector<8x64xf32>
    %cst_20 = arith.constant 0.000000e+00 : f32
    %35 = vector.broadcast %cst_20 : f32 to vector<8x64xf32>
    %36 = arith.maximumf %34, %35 : vector<8x64xf32>
    %c0_21 = arith.constant 0 : index
    %c0_22 = arith.constant 0 : index
    %37 = vector.load %arg8[%c0_21, %c0_22] : memref<1x64xf32, #tpu.memory_space<vmem>>, vector<1x64xf32>
    %c0_23 = arith.constant 0 : index
    %c0_24 = arith.constant 0 : index
    %38 = vector.load %arg9[%c0_23, %c0_24] : memref<1x64xf32, #tpu.memory_space<vmem>>, vector<1x64xf32>
    %39 = tpu.iota {dimensions = array<i32: 1>} : vector<1x64xi32>
    %c32_i32 = arith.constant 32 : i32
    %40 = vector.broadcast %c32_i32 : i32 to vector<1x64xi32>
    %41 = arith.cmpi slt, %39, %40 : vector<1x64xi32>
    %cst_25 = arith.constant 0.000000e+00 : f32
    %42 = vector.shape_cast %41 : vector<1x64xi1> to vector<1x64xi1>
    %43 = vector.broadcast %42 : vector<1x64xi1> to vector<8x64xi1>
    %44 = vector.broadcast %cst_25 : f32 to vector<8x64xf32>
    %45 = arith.select %43, %36, %44 : vector<8x64xi1>, vector<8x64xf32>
    %cst_26 = arith.constant dense<0.000000e+00> : vector<8xf32>
    %46 = vector.multi_reduction <add>, %45, %cst_26 [1] : vector<8x64xf32> to vector<8xf32>
    %47 = vector.shape_cast %46 : vector<8xf32> to vector<8x1xf32>
    %cst_27 = arith.constant 0.000000e+00 : f32
    %48 = vector.shape_cast %41 : vector<1x64xi1> to vector<1x64xi1>
    %49 = vector.broadcast %48 : vector<1x64xi1> to vector<8x64xi1>
    %50 = vector.broadcast %cst_27 : f32 to vector<8x64xf32>
    %51 = arith.select %49, %50, %36 : vector<8x64xi1>, vector<8x64xf32>
    %cst_28 = arith.constant dense<0.000000e+00> : vector<8xf32>
    %52 = vector.multi_reduction <add>, %51, %cst_28 [1] : vector<8x64xf32> to vector<8xf32>
    %53 = vector.shape_cast %52 : vector<8xf32> to vector<8x1xf32>
    %cst_29 = arith.constant 3.125000e-02 : f32
    %54 = vector.broadcast %cst_29 : f32 to vector<8x1xf32>
    %55 = arith.mulf %47, %54 : vector<8x1xf32>
    %cst_30 = arith.constant 3.125000e-02 : f32
    %56 = vector.broadcast %cst_30 : f32 to vector<8x1xf32>
    %57 = arith.mulf %53, %56 : vector<8x1xf32>
    %58 = vector.shape_cast %41 : vector<1x64xi1> to vector<1x64xi1>
    %59 = vector.broadcast %58 : vector<1x64xi1> to vector<8x64xi1>
    %60 = vector.shape_cast %55 : vector<8x1xf32> to vector<8x1xf32>
    %61 = vector.broadcast %60 : vector<8x1xf32> to vector<8x64xf32>
    %62 = vector.shape_cast %57 : vector<8x1xf32> to vector<8x1xf32>
    %63 = vector.broadcast %62 : vector<8x1xf32> to vector<8x64xf32>
    %64 = arith.select %59, %61, %63 : vector<8x64xi1>, vector<8x64xf32>
    %65 = arith.subf %36, %64 : vector<8x64xf32>
    %66 = arith.mulf %65, %65 : vector<8x64xf32>
    %cst_31 = arith.constant 0.000000e+00 : f32
    %67 = vector.shape_cast %41 : vector<1x64xi1> to vector<1x64xi1>
    %68 = vector.broadcast %67 : vector<1x64xi1> to vector<8x64xi1>
    %69 = vector.broadcast %cst_31 : f32 to vector<8x64xf32>
    %70 = arith.select %68, %66, %69 : vector<8x64xi1>, vector<8x64xf32>
    %cst_32 = arith.constant dense<0.000000e+00> : vector<8xf32>
    %71 = vector.multi_reduction <add>, %70, %cst_32 [1] : vector<8x64xf32> to vector<8xf32>
    %72 = vector.shape_cast %71 : vector<8xf32> to vector<8x1xf32>
    %cst_33 = arith.constant 3.125000e-02 : f32
    %73 = vector.broadcast %cst_33 : f32 to vector<8x1xf32>
    %74 = arith.mulf %72, %73 : vector<8x1xf32>
    %cst_34 = arith.constant 0.000000e+00 : f32
    %75 = vector.shape_cast %41 : vector<1x64xi1> to vector<1x64xi1>
    %76 = vector.broadcast %75 : vector<1x64xi1> to vector<8x64xi1>
    %77 = vector.broadcast %cst_34 : f32 to vector<8x64xf32>
    %78 = arith.select %76, %77, %66 : vector<8x64xi1>, vector<8x64xf32>
    %cst_35 = arith.constant dense<0.000000e+00> : vector<8xf32>
    %79 = vector.multi_reduction <add>, %78, %cst_35 [1] : vector<8x64xf32> to vector<8xf32>
    %80 = vector.shape_cast %79 : vector<8xf32> to vector<8x1xf32>
    %cst_36 = arith.constant 3.125000e-02 : f32
    %81 = vector.broadcast %cst_36 : f32 to vector<8x1xf32>
    %82 = arith.mulf %80, %81 : vector<8x1xf32>
    %83 = vector.shape_cast %41 : vector<1x64xi1> to vector<1x64xi1>
    %84 = vector.broadcast %83 : vector<1x64xi1> to vector<8x64xi1>
    %85 = vector.shape_cast %74 : vector<8x1xf32> to vector<8x1xf32>
    %86 = vector.broadcast %85 : vector<8x1xf32> to vector<8x64xf32>
    %87 = vector.shape_cast %82 : vector<8x1xf32> to vector<8x1xf32>
    %88 = vector.broadcast %87 : vector<8x1xf32> to vector<8x64xf32>
    %89 = arith.select %84, %86, %88 : vector<8x64xi1>, vector<8x64xf32>
    %cst_37 = arith.constant 9.99999974E-6 : f32
    %90 = vector.broadcast %cst_37 : f32 to vector<8x64xf32>
    %91 = arith.addf %89, %90 : vector<8x64xf32>
    %92 = math.rsqrt %91 : vector<8x64xf32>
    %93 = arith.mulf %65, %92 : vector<8x64xf32>
    %94 = vector.broadcast %37 : vector<1x64xf32> to vector<8x64xf32>
    %95 = arith.mulf %93, %94 : vector<8x64xf32>
    %96 = vector.broadcast %38 : vector<1x64xf32> to vector<8x64xf32>
    %97 = arith.addf %95, %96 : vector<8x64xf32>
    %c0_38 = arith.constant 0 : index
    %c0_39 = arith.constant 0 : index
    %98 = vector.load %arg10[%c0_38, %c0_39] : memref<64x4xf32, #tpu.memory_space<vmem>>, vector<64x4xf32>
    %cst_40 = arith.constant dense<0.000000e+00> : vector<8x4xf32>
    %99 = tpu.matmul %97, %98, %cst_40 {dimension_numbers = #tpu.dot_dimension_numbers<[1], [0], [0], [1], [0, 0, 1, 1], [], []>} : vector<8x64xf32>, vector<64x4xf32>, vector<8x4xf32> -> vector<8x4xf32>
    %c0_41 = arith.constant 0 : index
    %c0_42 = arith.constant 0 : index
    %100 = vector.load %arg11[%c0_41, %c0_42] : memref<1x4xf32, #tpu.memory_space<vmem>>, vector<1x4xf32>
    %101 = vector.broadcast %100 : vector<1x4xf32> to vector<8x4xf32>
    %102 = arith.addf %99, %101 : vector<8x4xf32>
    %c0_43 = arith.constant 0 : index
    %c0_44 = arith.constant 0 : index
    %103 = vector.load %arg12[%c0_43, %c0_44] : memref<8x4xf32, #tpu.memory_space<vmem>>, vector<8x4xf32>
    tpu.vector_store %arg12[%c0_43, %c0_44], %102 {strides = array<i32>} : memref<8x4xf32, #tpu.memory_space<vmem>>, vector<8x4xf32>,
    return
  }
  func.func @transform_0(%arg0: i32) -> (i32, i32) {
    %c0_i32 = arith.constant 0 : i32
    %c0_i32_0 = arith.constant 0 : i32
    return %arg0, %c0_i32 : i32, i32
  }
  func.func @transform_1(%arg0: i32) -> (i32, i32) {
    %c0_i32 = arith.constant 0 : i32
    %c0_i32_0 = arith.constant 0 : i32
    %c0_i32_1 = arith.constant 0 : i32
    return %c0_i32, %c0_i32_0 : i32, i32
  }
  func.func @transform_2(%arg0: i32) -> (i32, i32) {
    %c0_i32 = arith.constant 0 : i32
    %c0_i32_0 = arith.constant 0 : i32
    %c0_i32_1 = arith.constant 0 : i32
    return %c0_i32, %c0_i32_0 : i32, i32
  }
  func.func @transform_3(%arg0: i32) -> (i32, i32) {
    %c0_i32 = arith.constant 0 : i32
    %c0_i32_0 = arith.constant 0 : i32
    %c0_i32_1 = arith.constant 0 : i32
    return %c0_i32, %c0_i32_0 : i32, i32
  }
  func.func @transform_4(%arg0: i32) -> (i32, i32) {
    %c0_i32 = arith.constant 0 : i32
    %c0_i32_0 = arith.constant 0 : i32
    %c0_i32_1 = arith.constant 0 : i32
    return %c0_i32, %c0_i32_0 : i32, i32
  }
  func.func @transform_5(%arg0: i32) -> (i32, i32) {
    %c0_i32 = arith.constant 0 : i32
    %c0_i32_0 = arith.constant 0 : i32
    %c0_i32_1 = arith.constant 0 : i32
    return %c0_i32, %c0_i32_0 : i32, i32
  }
  func.func @transform_6(%arg0: i32) -> (i32, i32) {
    %c0_i32 = arith.constant 0 : i32
    %c0_i32_0 = arith.constant 0 : i32
    %c0_i32_1 = arith.constant 0 : i32
    return %c0_i32, %c0_i32_0 : i32, i32
  }
  func.func @transform_7(%arg0: i32) -> (i32, i32) {
    %c0_i32 = arith.constant 0 : i32
    %c0_i32_0 = arith.constant 0 : i32
    %c0_i32_1 = arith.constant 0 : i32
    return %c0_i32, %c0_i32_0 : i32, i32
  }
  func.func @transform_8(%arg0: i32) -> (i32, i32) {
    %c0_i32 = arith.constant 0 : i32
    %c0_i32_0 = arith.constant 0 : i32
    %c0_i32_1 = arith.constant 0 : i32
    return %c0_i32, %c0_i32_0 : i32, i32
  }
  func.func @transform_9(%arg0: i32) -> (i32, i32) {
    %c0_i32 = arith.constant 0 : i32
    %c0_i32_0 = arith.constant 0 : i32
    %c0_i32_1 = arith.constant 0 : i32
    return %c0_i32, %c0_i32_0 : i32, i32
  }
  func.func @transform_10(%arg0: i32) -> (i32, i32) {
    %c0_i32 = arith.constant 0 : i32
    %c0_i32_0 = arith.constant 0 : i32
    %c0_i32_1 = arith.constant 0 : i32
    return %c0_i32, %c0_i32_0 : i32, i32
  }
  func.func @transform_11(%arg0: i32) -> (i32, i32) {
    %c0_i32 = arith.constant 0 : i32
    %c0_i32_0 = arith.constant 0 : i32
    return %arg0, %c0_i32 : i32, i32
  }
}

</mosaic_0001>

<llo_original>
// kernel: dueling_dqn_forward.1
$region0: #{dueling_dqn_forward.1}
  #allocation0 [shape = 'u32[]', space=smem, size = 0x4, offset = 0x4, fixed_abs, tag = 'smem constant byte address 0x4 - core index']
  #allocation1 [shape = 'u32[144,128]{1,0:T(1,128)}', space=vmem, size = 0x12000, scoped, tag = 'internal scratch']
  %s0 = inlined_call_operand.vmem [shape: f32[8,16], index: 0, kind: input, shape index: {}]
  %s1 = inlined_call_operand.vmem [shape: f32[16,32], index: 1, kind: input, shape index: {}]
  %s2 = inlined_call_operand.vmem [shape: f32[1,32], index: 2, kind: input, shape index: {}]
  %s3 = inlined_call_operand.vmem [shape: f32[1,32], index: 3, kind: input, shape index: {}]
  %s4 = inlined_call_operand.vmem [shape: f32[1,32], index: 4, kind: input, shape index: {}]
  %s5 = inlined_call_operand.vmem [shape: f32[32,64], index: 5, kind: input, shape index: {}]
  %s6 = inlined_call_operand.vmem [shape: f32[1,64], index: 6, kind: input, shape index: {}]
  %s7 = inlined_call_operand.vmem [shape: f32[1,64], index: 7, kind: input, shape index: {}]
  %s8 = inlined_call_operand.vmem [shape: f32[1,64], index: 8, kind: input, shape index: {}]
  %s9 = inlined_call_operand.vmem [shape: f32[64,4], index: 9, kind: input, shape index: {}]
  %s10 = inlined_call_operand.vmem [shape: f32[1,4], index: 10, kind: input, shape index: {}]
  %s11 = inlined_call_operand.vmem [shape: f32[8,4], index: 11, kind: output, shape index: {}]
  %s12 = sld [smem:[#allocation0]]
  $region54: #{dueling_dqn_forward.1} parent=0
    _
  %s14 = ssub.s32 1, %s12
  %s15 = scalar_select 0, %s14, %s12
  // Predicated region
  $region2: #{dueling_dqn_forward.1} parent=0 // pred_check
    _
  $region3: #{dueling_dqn_forward.1} parent=0 // pred_check_branch
    %17 = sbr.rel (0) target = $region5
  $region4: #{dueling_dqn_forward.1} parent=0 // pred_region
    _
  $region5: #{dueling_dqn_forward.1} parent=0 // pred_fallthru
    _
  // Predicated region
  $region6: #{dueling_dqn_forward.1} parent=0 // pred_check
    _
  $region7: #{dueling_dqn_forward.1} parent=0 // pred_check_branch
    %19 = sbr.rel (0) target = $region9
  $region8: #{dueling_dqn_forward.1} parent=0 // pred_region
    _
  $region9: #{dueling_dqn_forward.1} parent=0 // pred_fallthru
    _
  // Predicated region
  $region10: #{dueling_dqn_forward.1} parent=0 // pred_check
    _
  $region11: #{dueling_dqn_forward.1} parent=0 // pred_check_branch
    %21 = sbr.rel (0) target = $region13
  $region12: #{dueling_dqn_forward.1} parent=0 // pred_region
    _
  $region13: #{dueling_dqn_forward.1} parent=0 // pred_fallthru
    _
  // Predicated region
  $region14: #{dueling_dqn_forward.1} parent=0 // pred_check
    _
  $region15: #{dueling_dqn_forward.1} parent=0 // pred_check_branch
    %23 = sbr.rel (0) target = $region17
  $region16: #{dueling_dqn_forward.1} parent=0 // pred_region
    _
  $region17: #{dueling_dqn_forward.1} parent=0 // pred_fallthru
    _
  // Predicated region
  $region18: #{dueling_dqn_forward.1} parent=0 // pred_check
    _
  $region19: #{dueling_dqn_forward.1} parent=0 // pred_check_branch
    %25 = sbr.rel (0) target = $region21
  $region20: #{dueling_dqn_forward.1} parent=0 // pred_region
    _
  $region21: #{dueling_dqn_forward.1} parent=0 // pred_fallthru
    _
  // Predicated region
  $region22: #{dueling_dqn_forward.1} parent=0 // pred_check
    _
  $region23: #{dueling_dqn_forward.1} parent=0 // pred_check_branch
    %27 = sbr.rel (0) target = $region25
  $region24: #{dueling_dqn_forward.1} parent=0 // pred_region
    _
  $region25: #{dueling_dqn_forward.1} parent=0 // pred_fallthru
    _
  // Predicated region
  $region26: #{dueling_dqn_forward.1} parent=0 // pred_check
    _
  $region27: #{dueling_dqn_forward.1} parent=0 // pred_check_branch
    %29 = sbr.rel (0) target = $region29
  $region28: #{dueling_dqn_forward.1} parent=0 // pred_region
    _
  $region29: #{dueling_dqn_forward.1} parent=0 // pred_fallthru
    _
  // Predicated region
  $region30: #{dueling_dqn_forward.1} parent=0 // pred_check
    _
  $region31: #{dueling_dqn_forward.1} parent=0 // pred_check_branch
    %31 = sbr.rel (0) target = $region33
  $region32: #{dueling_dqn_forward.1} parent=0 // pred_region
    _
  $region33: #{dueling_dqn_forward.1} parent=0 // pred_fallthru
    _
  // Predicated region
  $region34: #{dueling_dqn_forward.1} parent=0 // pred_check
    _
  $region35: #{dueling_dqn_forward.1} parent=0 // pred_check_branch
    %33 = sbr.rel (0) target = $region37
  $region36: #{dueling_dqn_forward.1} parent=0 // pred_region
    _
  $region37: #{dueling_dqn_forward.1} parent=0 // pred_fallthru
    _
  // Predicated region
  $region38: #{dueling_dqn_forward.1} parent=0 // pred_check
    _
  $region39: #{dueling_dqn_forward.1} parent=0 // pred_check_branch
    %35 = sbr.rel (0) target = $region41
  $region40: #{dueling_dqn_forward.1} parent=0 // pred_region
    _
  $region41: #{dueling_dqn_forward.1} parent=0 // pred_fallthru
    _
  // Predicated region
  $region42: #{dueling_dqn_forward.1} parent=0 // pred_check
    _
  $region43: #{dueling_dqn_forward.1} parent=0 // pred_check_branch
    %37 = sbr.rel (0) target = $region45
  $region44: #{dueling_dqn_forward.1} parent=0 // pred_region
    _
  $region45: #{dueling_dqn_forward.1} parent=0 // pred_fallthru
    _
  %v38 = vld [vmem:[%s1] sm:$0xff]
  %v39 = vld [vmem:[%s1 + $0x8] sm:$0xff]
  %v40 = vld [vmem:[%s0] sm:$0xff]
  %v41 = vld [vmem:[%s2] sm:$0x1]
  %v43 = vlaneseq
  %v44 = vshrl.u32 %v43, 7
  %v45 = vsub.s32 0, %v44
  %v46 = vrot.slane %v41, %v45
  %vm48 = vcmask 130048
  %v50 = vsel %vm48, %v40, 0
  %52 = vmatprep.subr.mxu0 0.0
  %53 = vmatpush1.msra.mxu0 %v38
  %54 = vmatprep.subr.mxu0 0.0
  %55 = vmatpush1.msra.mxu0 %v39
  %56 = vmatprep.subr.mxu0 0.0
  %57 = vmatpush1.msra.mxu0 0.0
  %58 = vmatprep.subr.mxu0 0.0
  %59 = vmatpush1.msra.mxu0 0.0
  %60 = vmatprep.subr.mxu0 0.0
  %61 = vmatpush1.msra.mxu0 0.0
  %62 = vmatprep.subr.mxu0 0.0
  %63 = vmatpush1.msra.mxu0 0.0
  %64 = vmatprep.subr.mxu0 0.0
  %65 = vmatpush1.msra.mxu0 0.0
  %66 = vmatprep.subr.mxu0 0.0
  %67 = vmatpush1.msra.mxu0 0.0
  %68 = vmatprep.subr.mxu0 0.0
  %69 = vmatpush1.msra.mxu0 0.0
  %70 = vmatprep.subr.mxu0 0.0
  %71 = vmatpush1.msra.mxu0 0.0
  %72 = vmatprep.subr.mxu0 0.0
  %73 = vmatpush1.msra.mxu0 0.0
  %74 = vmatprep.subr.mxu0 0.0
  %75 = vmatpush1.msra.mxu0 0.0
  %76 = vmatprep.subr.mxu0 0.0
  %77 = vmatpush1.msra.mxu0 0.0
  %78 = vmatprep.subr.mxu0 0.0
  %79 = vmatpush1.msra.mxu0 0.0
  %80 = vmatprep.subr.mxu0 0.0
  %81 = vmatpush1.msra.mxu0 0.0
  %82 = vmatprep.subr.mxu0 0.0
  %83 = vmatpush1.msra.mxu0 0.0
  %84 = vmatprep.subr.mxu0 0.0
  %85 = vmatpush1.msra.mxu0 0.0
  %86 = vmatprep.subr.mxu0 0.0
  %87 = vmatpush1.msra.mxu0 0.0
  %88 = vmatprep.subr.mxu0 0.0
  %89 = vmatpush1.msra.mxu0 0.0
  %90 = vmatprep.subr.mxu0 0.0
  %91 = vmatpush1.msra.mxu0 0.0
  %92 = vmatprep.subr.mxu0 0.0
  %93 = vmatpush1.msra.mxu0 0.0
  %94 = vmatprep.subr.mxu0 0.0
  %95 = vmatpush1.msra.mxu0 0.0
  %96 = vmatprep.subr.mxu0 0.0
  %97 = vmatpush1.msra.mxu0 0.0
  %98 = vmatprep.subr.mxu0 0.0
  %99 = vmatpush1.msra.mxu0 0.0
  %100 = vmatprep.subr.mxu0 0.0
  %101 = vmatpush1.msra.mxu0 0.0
  %102 = vmatprep.subr.mxu0 0.0
  %103 = vmatpush1.msra.mxu0 0.0
  %104 = vmatprep.subr.mxu0 0.0
  %105 = vmatpush1.msra.mxu0 0.0
  %106 = vmatprep.subr.mxu0 0.0
  %107 = vmatpush1.msra.mxu0 0.0
  %108 = vmatprep.subr.mxu0 0.0
  %109 = vmatpush1.msra.mxu0 0.0
  %110 = vmatprep.subr.mxu0 0.0
  %111 = vmatpush1.msra.mxu0 0.0
  %112 = vmatprep.subr.mxu0 0.0
  %113 = vmatpush1.msra.mxu0 0.0
  %114 = vmatprep.subr.mxu0 0.0
  %115 = vmatpush1.msra.mxu0 0.0
  %116 = vmatprep.mubr.f32.mxu0 0.0
  %117 = vmatmul.mubr.f32.gmra.mrb[0].mxu0 %v50
  %v118 = vpop.f32.mrb[0].mxu0
  %v119 = vadd.f32 %v46, %v118
  %v120 = vpop.f32.mrb[0].mxu0
  %121 = vdwg.mxu0
  %v122 = vmax.f32 %v119, 0.0
  %v123 = vld [vmem:[%s3] sm:$0x1]
  %v124 = vld [vmem:[%s4] sm:$0x1]
  %vm125 = vcmask 261120
  %v126 = vsel %vm125, %v122, 0.0
  %127 = vadd.xlane.f32.xlu0 %v126
  %v128 = vpop.xlane.xlu0 %127
  %v129 = vrcp.pop 32.0
  %v130 = vmul.f32 %v128, %v129
  %v131 = vsub.f32 %v122, %v130
  %v132 = vmul.f32 %v131, %v131
  %v133 = vsel %vm125, %v132, 0.0
  %134 = vadd.xlane.f32.xlu0 %v133
  %v135 = vpop.xlane.xlu0 %134
  %v136 = vmul.f32 %v135, %v129
  %v137 = vadd.f32 %v136, 1e-05
  %v138 = vrsqrt.pop %v137
  %v139 = vmul.f32 %v131, %v138
  %v141 = vlaneseq
  %v142 = vshrl.u32 %v141, 7
  %v143 = vsub.s32 0, %v142
  %v144 = vrot.slane %v123, %v143
  %v146 = vmul.f32 %v139, %v144
  %v148 = vlaneseq
  %v149 = vshrl.u32 %v148, 7
  %v150 = vsub.s32 0, %v149
  %v151 = vrot.slane %v124, %v150
  %v153 = vadd.f32 %v146, %v151
  %v154 = vld [vmem:[%s5] sm:$0xff]
  %v155 = vld [vmem:[%s5 + $0x8] sm:$0xff]
  %v156 = vld [vmem:[%s5 + $0x10] sm:$0xff]
  %v157 = vld [vmem:[%s5 + $0x18] sm:$0xff]
  %v158 = vld [vmem:[%s6] sm:$0x1]
  %v160 = vlaneseq
  %v161 = vshrl.u32 %v160, 7
  %v162 = vsub.s32 0, %v161
  %v163 = vrot.slane %v158, %v162
  %v166 = vsel %vm125, %v153, 0
  %168 = vmatprep.subr.mxu0 0.0
  %169 = vmatpush1.msra.mxu0 %v154
  %170 = vmatprep.subr.mxu0 0.0
  %171 = vmatpush1.msra.mxu0 %v155
  %172 = vmatprep.subr.mxu0 0.0
  %173 = vmatpush1.msra.mxu0 %v156
  %174 = vmatprep.subr.mxu0 0.0
  %175 = vmatpush1.msra.mxu0 %v157
  %176 = vmatprep.subr.mxu0 0.0
  %177 = vmatpush1.msra.mxu0 0.0
  %178 = vmatprep.subr.mxu0 0.0
  %179 = vmatpush1.msra.mxu0 0.0
  %180 = vmatprep.subr.mxu0 0.0
  %181 = vmatpush1.msra.mxu0 0.0
  %182 = vmatprep.subr.mxu0 0.0
  %183 = vmatpush1.msra.mxu0 0.0
  %184 = vmatprep.subr.mxu0 0.0
  %185 = vmatpush1.msra.mxu0 0.0
  %186 = vmatprep.subr.mxu0 0.0
  %187 = vmatpush1.msra.mxu0 0.0
  %188 = vmatprep.subr.mxu0 0.0
  %189 = vmatpush1.msra.mxu0 0.0
  %190 = vmatprep.subr.mxu0 0.0
  %191 = vmatpush1.msra.mxu0 0.0
  %192 = vmatprep.subr.mxu0 0.0
  %193 = vmatpush1.msra.mxu0 0.0
  %194 = vmatprep.subr.mxu0 0.0
  %195 = vmatpush1.msra.mxu0 0.0
  %196 = vmatprep.subr.mxu0 0.0
  %197 = vmatpush1.msra.mxu0 0.0
  %198 = vmatprep.subr.mxu0 0.0
  %199 = vmatpush1.msra.mxu0 0.0
  %200 = vmatprep.subr.mxu0 0.0
  %201 = vmatpush1.msra.mxu0 0.0
  %202 = vmatprep.subr.mxu0 0.0
  %203 = vmatpush1.msra.mxu0 0.0
  %204 = vmatprep.subr.mxu0 0.0
  %205 = vmatpush1.msra.mxu0 0.0
  %206 = vmatprep.subr.mxu0 0.0
  %207 = vmatpush1.msra.mxu0 0.0
  %208 = vmatprep.subr.mxu0 0.0
  %209 = vmatpush1.msra.mxu0 0.0
  %210 = vmatprep.subr.mxu0 0.0
  %211 = vmatpush1.msra.mxu0 0.0
  %212 = vmatprep.subr.mxu0 0.0
  %213 = vmatpush1.msra.mxu0 0.0
  %214 = vmatprep.subr.mxu0 0.0
  %215 = vmatpush1.msra.mxu0 0.0
  %216 = vmatprep.subr.mxu0 0.0
  %217 = vmatpush1.msra.mxu0 0.0
  %218 = vmatprep.subr.mxu0 0.0
  %219 = vmatpush1.msra.mxu0 0.0
  %220 = vmatprep.subr.mxu0 0.0
  %221 = vmatpush1.msra.mxu0 0.0
  %222 = vmatprep.subr.mxu0 0.0
  %223 = vmatpush1.msra.mxu0 0.0
  %224 = vmatprep.subr.mxu0 0.0
  %225 = vmatpush1.msra.mxu0 0.0
  %226 = vmatprep.subr.mxu0 0.0
  %227 = vmatpush1.msra.mxu0 0.0
  %228 = vmatprep.subr.mxu0 0.0
  %229 = vmatpush1.msra.mxu0 0.0
  %230 = vmatprep.subr.mxu0 0.0
  %231 = vmatpush1.msra.mxu0 0.0
  %232 = vmatprep.mubr.f32.mxu0 0.0
  %233 = vmatmul.mubr.f32.gmra.mrb[0].mxu0 %v166
  %v234 = vpop.f32.mrb[0].mxu0
  %v235 = vadd.f32 %v163, %v234
  %v236 = vpop.f32.mrb[0].mxu0
  %237 = vdwg.mxu0
  %v238 = vmax.f32 %v235, 0.0
  %v239 = vld [vmem:[%s7] sm:$0x1]
  %v240 = vld [vmem:[%s8] sm:$0x1]
  %v241 = vlaneseq
  %v242 = vand.u32 %v241, 127
  %vm243 = vcmp.lt.s32.totalorder %v242, 32
  %v244 = vsel %vm243, 1, 0
  %vm245 = vcmp.eq.s32.totalorder %v244, 1
  %v246 = vsel %vm245, %v238, 0.0
  %vm247 = vcmask 523264
  %v248 = vsel %vm247, %v246, 0.0
  %249 = vadd.xlane.f32.xlu0 %v248
  %v250 = vpop.xlane.xlu0 %249
  %v251 = vsel %vm245, 0.0, %v238
  %v252 = vsel %vm247, %v251, 0.0
  %253 = vadd.xlane.f32.xlu0 %v252
  %v254 = vpop.xlane.xlu0 %253
  %v255 = vmul.f32 %v250, 0.03125
  %v256 = vmul.f32 %v254, 0.03125
  %v257 = vsel %vm245, %v255, %v256
  %v258 = vsub.f32 %v238, %v257
  %v259 = vmul.f32 %v258, %v258
  %v260 = vsel %vm245, %v259, 0.0
  %v261 = vsel %vm247, %v260, 0.0
  %262 = vadd.xlane.f32.xlu0 %v261
  %v263 = vpop.xlane.xlu0 %262
  %v264 = vmul.f32 %v263, 0.03125
  %v265 = vsel %vm245, 0.0, %v259
  %v266 = vsel %vm247, %v265, 0.0
  %267 = vadd.xlane.f32.xlu0 %v266
  %v268 = vpop.xlane.xlu0 %267
  %v269 = vmul.f32 %v268, 0.03125
  %v270 = vsel %vm245, %v264, %v269
  %v271 = vadd.f32 %v270, 1e-05
  %v272 = vrsqrt.pop %v271
  %v273 = vmul.f32 %v258, %v272
  %v275 = vlaneseq
  %v276 = vshrl.u32 %v275, 7
  %v277 = vsub.s32 0, %v276
  %v278 = vrot.slane %v239, %v277
  %v280 = vmul.f32 %v273, %v278
  %v282 = vlaneseq
  %v283 = vshrl.u32 %v282, 7
  %v284 = vsub.s32 0, %v283
  %v285 = vrot.slane %v240, %v284
  %v287 = vadd.f32 %v280, %v285
  %v288 = vld [vmem:[%s9] sm:$0xff]
  %v289 = vld [vmem:[%s9 + $0x8] sm:$0xff]
  %v290 = vld [vmem:[%s9 + $0x10] sm:$0xff]
  %v291 = vld [vmem:[%s9 + $0x18] sm:$0xff]
  %v292 = vld [vmem:[%s9 + $0x20] sm:$0xff]
  %v293 = vld [vmem:[%s9 + $0x28] sm:$0xff]
  %v294 = vld [vmem:[%s9 + $0x30] sm:$0xff]
  %v295 = vld [vmem:[%s9 + $0x38] sm:$0xff]
  %v296 = vld [vmem:[%s10] sm:$0x1]
  %v298 = vlaneseq
  %v299 = vshrl.u32 %v298, 7
  %v300 = vsub.s32 0, %v299
  %v301 = vrot.slane %v296, %v300
  %v304 = vsel %vm247, %v287, 0
  %306 = vmatprep.subr.mxu0 0.0
  %307 = vmatpush1.msra.mxu0 %v288
  %308 = vmatprep.subr.mxu0 0.0
  %309 = vmatpush1.msra.mxu0 %v289
  %310 = vmatprep.subr.mxu0 0.0
  %311 = vmatpush1.msra.mxu0 %v290
  %312 = vmatprep.subr.mxu0 0.0
  %313 = vmatpush1.msra.mxu0 %v291
  %314 = vmatprep.subr.mxu0 0.0
  %315 = vmatpush1.msra.mxu0 %v292
  %316 = vmatprep.subr.mxu0 0.0
  %317 = vmatpush1.msra.mxu0 %v293
  %318 = vmatprep.subr.mxu0 0.0
  %319 = vmatpush1.msra.mxu0 %v294
  %320 = vmatprep.subr.mxu0 0.0
  %321 = vmatpush1.msra.mxu0 %v295
  %322 = vmatprep.subr.mxu0 0.0
  %323 = vmatpush1.msra.mxu0 0.0
  %324 = vmatprep.subr.mxu0 0.0
  %325 = vmatpush1.msra.mxu0 0.0
  %326 = vmatprep.subr.mxu0 0.0
  %327 = vmatpush1.msra.mxu0 0.0
  %328 = vmatprep.subr.mxu0 0.0
  %329 = vmatpush1.msra.mxu0 0.0
  %330 = vmatprep.subr.mxu0 0.0
  %331 = vmatpush1.msra.mxu0 0.0
  %332 = vmatprep.subr.mxu0 0.0
  %333 = vmatpush1.msra.mxu0 0.0
  %334 = vmatprep.subr.mxu0 0.0
  %335 = vmatpush1.msra.mxu0 0.0
  %336 = vmatprep.subr.mxu0 0.0
  %337 = vmatpush1.msra.mxu0 0.0
  %338 = vmatprep.subr.mxu0 0.0
  %339 = vmatpush1.msra.mxu0 0.0
  %340 = vmatprep.subr.mxu0 0.0
  %341 = vmatpush1.msra.mxu0 0.0
  %342 = vmatprep.subr.mxu0 0.0
  %343 = vmatpush1.msra.mxu0 0.0
  %344 = vmatprep.subr.mxu0 0.0
  %345 = vmatpush1.msra.mxu0 0.0
  %346 = vmatprep.subr.mxu0 0.0
  %347 = vmatpush1.msra.mxu0 0.0
  %348 = vmatprep.subr.mxu0 0.0
  %349 = vmatpush1.msra.mxu0 0.0
  %350 = vmatprep.subr.mxu0 0.0
  %351 = vmatpush1.msra.mxu0 0.0
  %352 = vmatprep.subr.mxu0 0.0
  %353 = vmatpush1.msra.mxu0 0.0
  %354 = vmatprep.subr.mxu0 0.0
  %355 = vmatpush1.msra.mxu0 0.0
  %356 = vmatprep.subr.mxu0 0.0
  %357 = vmatpush1.msra.mxu0 0.0
  %358 = vmatprep.subr.mxu0 0.0
  %359 = vmatpush1.msra.mxu0 0.0
  %360 = vmatprep.subr.mxu0 0.0
  %361 = vmatpush1.msra.mxu0 0.0
  %362 = vmatprep.subr.mxu0 0.0
  %363 = vmatpush1.msra.mxu0 0.0
  %364 = vmatprep.subr.mxu0 0.0
  %365 = vmatpush1.msra.mxu0 0.0
  %366 = vmatprep.subr.mxu0 0.0
  %367 = vmatpush1.msra.mxu0 0.0
  %368 = vmatprep.subr.mxu0 0.0
  %369 = vmatpush1.msra.mxu0 0.0
  %370 = vmatprep.mubr.f32.mxu0 0.0
  %371 = vmatmul.mubr.f32.gmra.mrb[0].mxu0 %v304
  %v372 = vpop.f32.mrb[0].mxu0
  %v373 = vadd.f32 %v301, %v372
  %v374 = vpop.f32.mrb[0].mxu0
  %375 = vdwg.mxu0
  %vm376 = vcmask 31744
  %377 = vst.msk [vmem:[%s11] sm:$0xff] %vm376, %v373
  // Predicated region
  $region46: #{dueling_dqn_forward.1} parent=0 // pred_check
    _
  $region47: #{dueling_dqn_forward.1} parent=0 // pred_check_branch
    %379 = sbr.rel (0) target = $region49
  $region48: #{dueling_dqn_forward.1} parent=0 // pred_region
    _
  $region49: #{dueling_dqn_forward.1} parent=0 // pred_fallthru
    _
  // Predicated region
  $region50: #{dueling_dqn_forward.1} parent=0 // pred_check
    _
  $region51: #{dueling_dqn_forward.1} parent=0 // pred_check_branch
    %381 = sbr.rel (0) target = $region53
  $region52: #{dueling_dqn_forward.1} parent=0 // pred_region
    _
  $region53: #{dueling_dqn_forward.1} parent=0 // pred_fallthru
    _

</llo_original>
